<compile_context>
chip_gen: v5e
topology: v5e:2x2
jax: 0.10.0
libtpu: 0.0.40
codegen_flags: <defaults>
</compile_context>

<pallas_src>
import math
import jax
import jax.numpy as jnp
from jax import lax
from jax.experimental import pallas as pl
from jax.experimental.pallas import tpu as pltpu


def _gating_kernel(x_ref, w_ref, b_ref, o_ref):
    # x_ref: (TB, D) streamed, w_ref: (D, 2) resident, b_ref: (2,) f32 in SMEM,
    # o_ref: (TB, 2)
    logits = lax.dot_general(
        x_ref[...], w_ref[...],
        dimension_numbers=(((1,), (0,)), ((), ())),   # (TB, D) @ (D, 2): native MXU shape
        preferred_element_type=jnp.float32,
    )                                                  # (TB, 2), f32 accumulate
    # Bias from SMEM scalars, broadcast per output column (no padded VMEM tile / extra
    # input pipeline for a 2-element vector).
    col = lax.broadcasted_iota(jnp.int32, logits.shape, 1)
    logits = logits + jnp.where(col == 0, b_ref[0], b_ref[1])
    # Exact sigmoid: exp on the EUP + exact divide; both hide under the x DMA stream.
    gate = 1.0 / (1.0 + jnp.exp(-logits))
    # TODO(synk): if output stores ever show on the critical path (huge B, tiny D),
    # switch to a lane-dense (2, B) output layout instead of (TB, 2) tiles.
    o_ref[...] = gate.astype(o_ref.dtype)


def _vmem_params():
    """(x double-buffer budget, vmem_limit_bytes) for this TPU generation."""
    cap = 64 * 1024 * 1024   # conservative default (v7x per-TC VMEM)
    try:
        cap = int(getattr(pltpu.get_tpu_info(), "vmem_capacity_bytes", cap))
    except Exception:
        pass
    if cap >= 128 * 1024 * 1024:                  # v5e / v6e: 128 MiB physical VMEM
        return 24 * 1024 * 1024, 64 * 1024 * 1024
    return 12 * 1024 * 1024, 32 * 1024 * 1024     # v7x (64 MiB per TC) or unknown


def _choose_batch_tile(B, D, itemsize, vmem_budget_bytes):
    """Batch tile sized by bytes: one double-buffered x block ~= budget/2 per buffer."""
    bytes_per_row = max(D * itemsize, 1)
    tb = vmem_budget_bytes // (2 * bytes_per_row)
    tb = max(8, min(tb, B))
    # Keep >= 2 grid steps when possible so the pipeline has work in flight and v7x's
    # two TensorCores can both take tiles; extra cost elsewhere is one ~0.35 us step.
    if B >= 16:
        half = ((-(-B // 2)) + 7) // 8 * 8        # ceil(B/2), rounded up to sublane mult
        tb = min(tb, half)
    if tb < B:
        tb = max(8, (tb // 8) * 8)                # (8,128) rule: sublane dim multiple of 8
    return tb


def gating_mechanism(x, weight, bias, *, batch_tile=None):
    """x: (B, D), weight: (2, D), bias: (2,) -> (B, 2) sigmoid(x @ W^T + b)."""
    B, D = x.shape
    # One-time transpose to (D, 2): the in-kernel contraction is then the native MXU
    # LHS(M,K) x RHS(K,N) form (no per-step relayout of W).  Explicit mixed-precision
    # choice: the weight matches x's stream dtype (f32 stays f32; bf16 x -> bf16 w);
    # accumulation and bias stay f32.
    w = weight.T.astype(x.dtype)                  # (D, 2)
    b = bias.reshape(2).astype(jnp.float32)       # (2,) -> SMEM scalars

    itemsize = jnp.dtype(x.dtype).itemsize
    budget, vmem_limit = _vmem_params()
    tb = batch_tile if batch_tile is not None else _choose_batch_tile(B, D, itemsize, budget)
    tb = max(1, min(tb, B))
    grid = (pl.cdiv(B, tb),)

    cost = pl.CostEstimate(
        flops=4 * B * D + 6 * B,
        transcendentals=2 * B,
        bytes_accessed=B * D * itemsize + D * 2 * itemsize + 2 * 4 + B * 2 * itemsize,
    )

    return pl.pallas_call(
        _gating_kernel,
        out_shape=jax.ShapeDtypeStruct((B, 2), x.dtype),
        grid_spec=pltpu.PrefetchScalarGridSpec(
            num_scalar_prefetch=0,
            grid=grid,
            in_specs=[
                pl.BlockSpec((tb, D), lambda i: (i, 0)),            # streamed, double-buffered x
                pl.BlockSpec((D, 2), lambda i: (0, 0)),             # resident weight (D, 2)
                pl.BlockSpec(memory_space=pltpu.MemorySpace.SMEM),  # 2-scalar bias in SMEM
            ],
            out_specs=pl.BlockSpec((tb, 2), lambda i: (i, 0)),
        ),
        compiler_params=pltpu.CompilerParams(
            # "parallel" shards the batch grid across v7x's two TensorCores and is
            # neutral on single-TC v5e/v6e.
            # TODO(synk): switch to pltpu.CORE_PARALLEL once generation detection is
            # plumbed through, to guarantee the 2-TC split on v7x.
            dimension_semantics=("parallel",),
            vmem_limit_bytes=vmem_limit,
            # x is the only real data stream; let XLA fuse an elementwise producer into
            # it instead of materializing x in HBM solely for this kernel.
            allow_input_fusion=[True, False, False],
        ),
        cost_estimate=cost,
    )(x, w, b)


if __name__ == "__main__":
    key = jax.random.PRNGKey(0)
    B, D = 16, 64   # small demo shape consistent with GatingMechanism(input_dim=64)

    k_x, k_w, k_b = jax.random.split(key, 3)
    x = jax.random.normal(k_x, (B, D), dtype=jnp.float32)

    # Deterministic params mimicking nn.Linear default init: U(-1/sqrt(D), 1/sqrt(D))
    bound = 1.0 / math.sqrt(D)
    weight = jax.random.uniform(k_w, (2, D), minval=-bound, maxval=bound,
                                dtype=jnp.float32)
    bias = jax.random.uniform(k_b, (2,), minval=-bound, maxval=bound,
                              dtype=jnp.float32)

    ref = jax.nn.sigmoid(x @ weight.T + bias)

    # Explicit small tile -> exercises a multi-step grid.
    out = jax.block_until_ready(gating_mechanism(x, weight, bias, batch_tile=8))
    assert out.shape == (B, 2)
    assert jnp.allclose(out, ref, atol=1e-5, rtol=1e-5), (
        f"max abs err {jnp.max(jnp.abs(out - ref))}")

    # Default path: byte-sized tile chooser + generation-aware VMEM params.
    out2 = jax.block_until_ready(gating_mechanism(x, weight, bias))
    assert jnp.allclose(out2, ref, atol=1e-5, rtol=1e-5), (
        f"max abs err {jnp.max(jnp.abs(out2 - ref))}")

    print("KERNEL_OK")
</pallas_src>

<mosaic_0001>
module attributes {stable_mosaic.version = 11 : i64} {
  func.func @_gating_kernel(%arg0: i32, %arg1: memref<8x64xf32, #tpu.memory_space<vmem>>, %arg2: memref<64x2xf32, #tpu.memory_space<vmem>>, %arg3: memref<2xf32, #tpu.memory_space<smem>>, %arg4: memref<8x2xf32, #tpu.memory_space<vmem>>) attributes {dimension_semantics = [#tpu.dimension_semantics<parallel>], iteration_bounds = array<i64: 2>, scalar_prefetch = 0 : i64, scratch_operands = 0 : i64, tpu.core_type = #tpu.core_type<tc>, window_params = [{transform_indices = @transform_0, window_bounds = array<i64: 8, 64>}, {pipeline_mode = #tpu.pipeline_mode<synchronous>, transform_indices = @transform_1, window_bounds = array<i64: 64, 2>}, {transform_indices = @transform_2, window_bounds = array<i64: 2>}, {transform_indices = @transform_3, window_bounds = array<i64: 8, 2>}]} {
    %c0 = arith.constant 0 : index
    %c0_0 = arith.constant 0 : index
    %0 = vector.load %arg1[%c0, %c0_0] : memref<8x64xf32, #tpu.memory_space<vmem>>, vector<8x64xf32>
    %c0_1 = arith.constant 0 : index
    %c0_2 = arith.constant 0 : index
    %1 = vector.load %arg2[%c0_1, %c0_2] : memref<64x2xf32, #tpu.memory_space<vmem>>, vector<64x2xf32>
    %cst = arith.constant dense<0.000000e+00> : vector<8x2xf32>
    %2 = tpu.matmul %0, %1, %cst {dimension_numbers = #tpu.dot_dimension_numbers<[1], [0], [0], [1], [0, 0, 1, 1], [], []>} : vector<8x64xf32>, vector<64x2xf32>, vector<8x2xf32> -> vector<8x2xf32>
    %3 = tpu.iota {dimensions = array<i32: 1>} : vector<8x2xi32>
    %c0_i32 = arith.constant 0 : i32
    %4 = vector.broadcast %c0_i32 : i32 to vector<8x2xi32>
    %5 = arith.cmpi eq, %3, %4 : vector<8x2xi32>
    %c0_3 = arith.constant 0 : index
    %6 = memref.load %arg3[%c0_3] : memref<2xf32, #tpu.memory_space<smem>>
    %c1 = arith.constant 1 : index
    %7 = memref.load %arg3[%c1] : memref<2xf32, #tpu.memory_space<smem>>
    %8 = vector.broadcast %6 : f32 to vector<8x2xf32>
    %9 = vector.broadcast %7 : f32 to vector<8x2xf32>
    %10 = arith.select %5, %8, %9 : vector<8x2xi1>, vector<8x2xf32>
    %11 = arith.addf %2, %10 : vector<8x2xf32>
    %cst_4 = arith.constant 0.000000e+00 : f32
    %12 = vector.broadcast %cst_4 : f32 to vector<8x2xf32>
    %13 = arith.subf %12, %11 : vector<8x2xf32>
    %14 = math.exp %13 : vector<8x2xf32>
    %cst_5 = arith.constant 1.000000e+00 : f32
    %15 = vector.broadcast %cst_5 : f32 to vector<8x2xf32>
    %16 = arith.addf %15, %14 : vector<8x2xf32>
    %cst_6 = arith.constant 1.000000e+00 : f32
    %17 = vector.broadcast %cst_6 : f32 to vector<8x2xf32>
    %18 = arith.divf %17, %16 : vector<8x2xf32>
    %c0_7 = arith.constant 0 : index
    %c0_8 = arith.constant 0 : index
    %19 = vector.load %arg4[%c0_7, %c0_8] : memref<8x2xf32, #tpu.memory_space<vmem>>, vector<8x2xf32>
    tpu.vector_store %arg4[%c0_7, %c0_8], %18 {strides = array<i32>} : memref<8x2xf32, #tpu.memory_space<vmem>>, vector<8x2xf32>,
    return
  }
  func.func @transform_0(%arg0: i32) -> (i32, i32) {
    %c0_i32 = arith.constant 0 : i32
    %c0_i32_0 = arith.constant 0 : i32
    return %arg0, %c0_i32 : i32, i32
  }
  func.func @transform_1(%arg0: i32) -> (i32, i32) {
    %c0_i32 = arith.constant 0 : i32
    %c0_i32_0 = arith.constant 0 : i32
    %c0_i32_1 = arith.constant 0 : i32
    return %c0_i32, %c0_i32_0 : i32, i32
  }
  func.func @transform_2(%arg0: i32) -> i32 {
    %c0_i32 = arith.constant 0 : i32
    %c0_i32_0 = arith.constant 0 : i32
    return %c0_i32 : i32
  }
  func.func @transform_3(%arg0: i32) -> (i32, i32) {
    %c0_i32 = arith.constant 0 : i32
    %c0_i32_0 = arith.constant 0 : i32
    return %arg0, %c0_i32 : i32, i32
  }
}

</mosaic_0001>

<llo_original>
// kernel: tpu_custom_call.1
$region0: #{tpu_custom_call.1}
  #allocation0 [shape = 'u32[]', space=smem, size = 0x4, offset = 0x4, fixed_abs, tag = 'smem constant byte address 0x4 - core index']
  #allocation1 [shape = 'u32[72,128]{1,0:T(1,128)}', space=vmem, size = 0x9000, scoped, tag = 'internal scratch']
  %s0 = inlined_call_operand.vmem [shape: f32[16,64], index: 0, kind: input, shape index: {}]
  %s1 = inlined_call_operand.vmem [shape: f32[64,2], index: 1, kind: input, shape index: {}]
  %s2 = inlined_call_operand.vmem [shape: f32[2], index: 2, kind: input, shape index: {}]
  %s3 = inlined_call_operand.vmem [shape: f32[16,2], index: 3, kind: output, shape index: {}]
  %s4 = sld [smem:[#allocation0]]
  $region49: #{tpu_custom_call.1} parent=0
    _
  %s6 = ssub.s32 1, %s4
  %s7 = scalar_select 0, %s6, %s4
  $region1: #{tpu_custom_call.1} parent=0
    #allocation2 [shape = 'u8[512]{0}', space=smem, size = 0x200, scoped, tag = 'input window, operand 2, single buffered']
    #allocation3 [shape = 's32[2]{0}', space=sflag, size = 0x8, scoped, tag = 'scoped memory for tpu_custom_call.1']
    %8 = vsyncpa [#allocation3], 0
    loop: start=0, step=1, limit=4
    $region2: #{tpu_custom_call.1} parent=1 // loop_pre_header
      _
    $region3: #{tpu_custom_call.1} parent=1 // loop_header
      %s10 = sphi 0, %s14
      %p11 = scmp.ge.s32.totalorder %s10, 4
      %s20 = sphi 0, %s22
      %s23 = sphi 0, %s20
      %s24 = sphi 0, %s23
      %s40 = sphi 0, %s24
      %s44 = sphi 0, %s44
      %s46 = sphi 0, %s44
      %s47 = sphi 0, %s46
      %s61 = sphi 0, %s47
      %s65 = sphi 0, %s65
      %s67 = sphi 0, %s65
      %s68 = sphi 0, %s67
      %s82 = sphi 0, %s68
      %s88 = sphi 0, %s90
      %s91 = sphi 0, %s88
      %s92 = sphi 0, %s91
      %s108 = sphi 0, %s92
    $region4: #{tpu_custom_call.1} parent=1 // loop_header_branch
      %13 = sbr.rel (%p11) target = $region8
    $region5: #{tpu_custom_call.1} parent=1 // loop_body
      %s15 = ssub.s32 %s10, 1
      %s16 = ssub.s32 %s10, 2
      %s17 = sadd.s32 %s10, 1
      %s18 = ssub.s32 %s10, %s17
      %p19 = scmp.eq.s32.totalorder %s18, 0
      %s21 = sadd.s32 %s20, 1
      %s22 = scalar_select %p19, %s20, %s21
      %p25 = pneg %p19
      %p26 = scmp.eq.s32.totalorder %s10, 1
      %p27 = por %p25, %p26
      %p28 = scmp.ne.s32.totalorder %s20, %s23
      %p29 = scmp.eq.s32.totalorder %s10, 0
      %p30 = por %p28, %p29
      %p31 = scmp.ne.s32.totalorder %s20, %s23
      %p32 = scmp.eq.s32.totalorder %s15, 1
      %p33 = por %p31, %p32
      %p34 = scmp.ne.s32.totalorder %s23, %s24
      %p35 = scmp.eq.s32.totalorder %s15, 0
      %p36 = por %p34, %p35
      %p37 = scmp.ne.s32.totalorder %s23, %s24
      %p38 = scmp.eq.s32.totalorder %s16, 1
      %p39 = por %p37, %p38
      %p41 = scmp.ne.s32.totalorder %s24, %s40
      %p42 = scmp.eq.s32.totalorder %s16, 0
      %p43 = por %p41, %p42
      %s45 = sadd.s32 %s44, 1
      %p48 = scmp.eq.s32.totalorder %s10, 1
      %p49 = scmp.ne.s32.totalorder %s44, %s46
      %p50 = scmp.eq.s32.totalorder %s10, 0
      %p51 = por %p49, %p50
      %p52 = scmp.ne.s32.totalorder %s44, %s46
      %p53 = scmp.eq.s32.totalorder %s15, 1
      %p54 = por %p52, %p53
      %p55 = scmp.ne.s32.totalorder %s46, %s47
      %p56 = scmp.eq.s32.totalorder %s15, 0
      %p57 = por %p55, %p56
      %p58 = scmp.ne.s32.totalorder %s46, %s47
      %p59 = scmp.eq.s32.totalorder %s16, 1
      %p60 = por %p58, %p59
      %p62 = scmp.ne.s32.totalorder %s47, %s61
      %p63 = scmp.eq.s32.totalorder %s16, 0
      %p64 = por %p62, %p63
      %s66 = sadd.s32 %s65, 1
      %p69 = scmp.eq.s32.totalorder %s10, 1
      %p70 = scmp.ne.s32.totalorder %s65, %s67
      %p71 = scmp.eq.s32.totalorder %s10, 0
      %p72 = por %p70, %p71
      %p73 = scmp.ne.s32.totalorder %s65, %s67
      %p74 = scmp.eq.s32.totalorder %s15, 1
      %p75 = por %p73, %p74
      %p76 = scmp.ne.s32.totalorder %s67, %s68
      %p77 = scmp.eq.s32.totalorder %s15, 0
      %p78 = por %p76, %p77
      %p79 = scmp.ne.s32.totalorder %s67, %s68
      %p80 = scmp.eq.s32.totalorder %s16, 1
      %p81 = por %p79, %p80
      %p83 = scmp.ne.s32.totalorder %s68, %s82
      %p84 = scmp.eq.s32.totalorder %s16, 0
      %p85 = por %p83, %p84
      %s86 = ssub.s32 %s10, %s17
      %p87 = scmp.eq.s32.totalorder %s86, 0
      %s89 = sadd.s32 %s88, 1
      %s90 = scalar_select %p87, %s88, %s89
      %p93 = pneg %p87
      %p94 = scmp.eq.s32.totalorder %s10, 1
      %p95 = por %p93, %p94
      %p96 = scmp.ne.s32.totalorder %s88, %s91
      %p97 = scmp.eq.s32.totalorder %s10, 0
      %p98 = por %p96, %p97
      %p99 = scmp.ne.s32.totalorder %s88, %s91
      %p100 = scmp.eq.s32.totalorder %s15, 1
      %p101 = por %p99, %p100
      %p102 = scmp.ne.s32.totalorder %s91, %s92
      %p103 = scmp.eq.s32.totalorder %s15, 0
      %p104 = por %p102, %p103
      %p105 = scmp.ne.s32.totalorder %s91, %s92
      %p106 = scmp.eq.s32.totalorder %s16, 1
      %p107 = por %p105, %p106
      %p109 = scmp.ne.s32.totalorder %s92, %s108
      %p110 = scmp.eq.s32.totalorder %s16, 0
      %p111 = por %p109, %p110
      %p112 = scmp.le.s32.totalorder 1, %s10
      %p113 = scmp.lt.s32.totalorder %s10, 3
      %p114 = pnand %p112, %p113
      %p115 = pneg %p114
      // Predicated region
      $region9: #{tpu_custom_call.1} parent=5 // pred_check
        _
      $region10: #{tpu_custom_call.1} parent=5 // pred_check_branch
        %117 = sbr.rel (%p114) target = $region12
      $region11: #{tpu_custom_call.1} parent=5 // pred_region
        %s118 = ssub.s32 %s10, 1
        // Predicated region
        $region13: #{tpu_custom_call.1} parent=11 // pred_check
          %p119 = pneg %p57
        $region14: #{tpu_custom_call.1} parent=11 // pred_check_branch
          %121 = sbr.rel (%p119) target = $region16
        $region15: #{tpu_custom_call.1} parent=11 // pred_region
          _
        $region16: #{tpu_custom_call.1} parent=11 // pred_fallthru
          _
        // Predicated region
        $region17: #{tpu_custom_call.1} parent=11 // pred_check
          %p122 = pneg %p78
        $region18: #{tpu_custom_call.1} parent=11 // pred_check_branch
          %124 = sbr.rel (%p122) target = $region20
        $region19: #{tpu_custom_call.1} parent=11 // pred_region
          %126 = vsyncadd [#allocation3], 0
          %s128 = sshll.u32 %s2, 4
          %s129 = int_to_ptr.vmem [resolvable:$true] %s128
          %131 = dma.vmem_to_smem %s129, 16, [#allocation2], [#allocation3]
        $region20: #{tpu_custom_call.1} parent=11 // pred_fallthru
          _
      $region12: #{tpu_custom_call.1} parent=5 // pred_fallthru
        _
      %p132 = scmp.lt.s32.totalorder %s10, 2
      // Predicated region
      $region21: #{tpu_custom_call.1} parent=5 // pred_check
        %p133 = pneg %p132
      $region22: #{tpu_custom_call.1} parent=5 // pred_check_branch
        %135 = sbr.rel (%p133) target = $region24
      $region23: #{tpu_custom_call.1} parent=5 // pred_region
        // Predicated region
        $region25: #{tpu_custom_call.1} parent=23 // pred_check
          %p136 = pneg %p30
        $region26: #{tpu_custom_call.1} parent=23 // pred_check_branch
          %138 = sbr.rel (%p136) target = $region28
        $region27: #{tpu_custom_call.1} parent=23 // pred_region
          %p139 = scmp.lt.s32.totalorder %s10, 1
          %s140 = scalar_select %p139, %s10, 1
          %s141 = smul.addr %s140, 8
          %s142 = scalar_lea.vmem %s0, %s141
        $region28: #{tpu_custom_call.1} parent=23 // pred_fallthru
          _
      $region24: #{tpu_custom_call.1} parent=5 // pred_fallthru
        _
      %p143 = scmp.le.s32.totalorder 1, %s10
      %p144 = scmp.lt.s32.totalorder %s10, 3
      %p145 = pnand %p143, %p144
      %p146 = pneg %p145
      // Predicated region
      $region29: #{tpu_custom_call.1} parent=5 // pred_check
        _
      $region30: #{tpu_custom_call.1} parent=5 // pred_check_branch
        %148 = sbr.rel (%p145) target = $region32
      $region31: #{tpu_custom_call.1} parent=5 // pred_region
        %s149 = ssub.s32 %s10, 1
        // Predicated region
        $region33: #{tpu_custom_call.1} parent=31 // pred_check
          %p150 = pneg %p78
        $region34: #{tpu_custom_call.1} parent=31 // pred_check_branch
          %152 = sbr.rel (%p150) target = $region36
        $region35: #{tpu_custom_call.1} parent=31 // pred_region
          %154 = dma.done [#allocation3], 16
        $region36: #{tpu_custom_call.1} parent=31 // pred_fallthru
          _
        %155 = sfence
        %p156 = scmp.lt.s32.totalorder %s15, 1
        %s157 = scalar_select %p156, %s15, 1
        %s158 = smul.addr %s157, 8
        %s159 = scalar_lea.vmem %s0, %s158
        %p160 = pneg %p36
        %p161 = pneg %p33
        %p162 = pneg %p57
        %p163 = pneg %p54
        %p164 = pneg %p78
        %p165 = pneg %p75
        %p166 = pneg %p104
        %p167 = pneg %p101
        %p168 = scmp.lt.s32.totalorder %s15, 1
        %s169 = scalar_select %p168, %s15, 1
        %s170 = smul.addr %s169, 8
        %s171 = scalar_lea.vmem %s3, %s170
        %p172 = scmp.lt.s32.totalorder %s15, 1
        %s173 = scalar_select %p172, %s15, 1
        %s174 = smul.addr %s173, 8
        %s175 = scalar_lea.vmem %s0, %s174
        %p176 = scmp.lt.s32.totalorder %s15, 1
        %s177 = scalar_select %p176, %s15, 1
        %s178 = smul.addr %s177, 8
        %s179 = scalar_lea.vmem %s3, %s178
        %v180 = vld [vmem:[%s175] sm:$0xff]
        %v181 = vld [vmem:[%s1] sm:$0xff]
        %v182 = vld [vmem:[%s1 + $0x8] sm:$0xff]
        %v183 = vld [vmem:[%s1 + $0x10] sm:$0xff]
        %v184 = vld [vmem:[%s1 + $0x18] sm:$0xff]
        %v185 = vld [vmem:[%s1 + $0x20] sm:$0xff]
        %v186 = vld [vmem:[%s1 + $0x28] sm:$0xff]
        %v187 = vld [vmem:[%s1 + $0x30] sm:$0xff]
        %v188 = vld [vmem:[%s1 + $0x38] sm:$0xff]
        %v189 = vlaneseq
        %v190 = vand.u32 %v189, 127
        %vm191 = vcmp.eq.s32.totalorder %v190, 0
        %s192 = sld [smem:[#allocation2]]
        %s193 = sld [smem:[#allocation2 + $0x1]]
        %v194 = vstv %s192
        %v195 = vstv %s193
        %v196 = vsel %vm191, %v194, %v195
        %vm197 = vcmask 523264
        %v199 = vsel %vm197, %v180, 0
        %201 = vmatpush.msra.mxu0 0.0
        %202 = vmatpush.msra.mxu0 0.0
        %203 = vmatpush.msra.mxu0 0.0
        %204 = vmatpush.msra.mxu0 0.0
        %205 = vmatpush.msra.mxu0 0.0
        %206 = vmatpush.msra.mxu0 0.0
        %207 = vmatpush.msra.mxu0 0.0
        %208 = vmatpush.msra.mxu0 0.0
        %209 = vmatpush.msra.mxu0 %v188
        %210 = vmatpush.msra.mxu0 %v187
        %211 = vmatpush.msra.mxu0 %v186
        %212 = vmatpush.msra.mxu0 %v185
        %213 = vmatpush.msra.mxu0 %v184
        %214 = vmatpush.msra.mxu0 %v183
        %215 = vmatpush.msra.mxu0 %v182
        %216 = vmatpush.msra.mxu0 %v181
        %217 = vmatmul.f32.gmra.mxu0 %v199
        %v218 = vpop.f32.mrf.mxu0
        %v219 = vadd.f32 %v196, %v218
        %220 = vdwg.mxu0
        %v221 = vsub.f32 0.0, %v219
        %v222 = vmul.f32 %v221, 1.442695
        %v223 = vpow.pop %v222
        %v224 = vadd.f32 %v223, 1.0
        %v225 = vrcp.pop %v224
        %v226 = vmul.f32 %v224, %v225
        %v227 = vsub.f32 1.0, %v226
        %v228 = vmul.f32 %v225, %v227
        %v229 = vadd.f32 %v225, %v228
        %vm230 = vweird.f32 %v224
        %vm231 = vweird.f32 %v225
        %vm232 = vmor %vm230, %vm231
        %v233 = vsel %vm232, %v225, %v229
        %v234 = vand.u32 2147483647, %v224
        %vm235 = vcmp.eq.f32.partialorder %v234, 8.507059e+37
        %v236 = vand.u32 %v224, 2147483648
        %v237 = vor.u32 1.1754944e-38, %v236
        %v238 = vsel %vm235, %v237, %v233
        %v239 = vmul.f32 1.0, %v238
        %vm240 = vcmask 15360
        %241 = vst.msk [vmem:[%s179] sm:$0xff] %vm240, %v239
        %p242 = scmp.lt.s32.totalorder %s15, 1
        %s243 = scalar_select %p242, %s15, 1
        %s244 = smul.addr %s243, 8
        %s245 = scalar_lea.vmem %s3, %s244
        // Predicated region
        $region37: #{tpu_custom_call.1} parent=31 // pred_check
          %p246 = pneg %p101
        $region38: #{tpu_custom_call.1} parent=31 // pred_check_branch
          %248 = sbr.rel (%p246) target = $region40
        $region39: #{tpu_custom_call.1} parent=31 // pred_region
          _
        $region40: #{tpu_custom_call.1} parent=31 // pred_fallthru
          _
      $region32: #{tpu_custom_call.1} parent=5 // pred_fallthru
        _
      %p249 = scmp.le.s32.totalorder 2, %s10
      // Predicated region
      $region41: #{tpu_custom_call.1} parent=5 // pred_check
        %p250 = pneg %p249
      $region42: #{tpu_custom_call.1} parent=5 // pred_check_branch
        %252 = sbr.rel (%p250) target = $region44
      $region43: #{tpu_custom_call.1} parent=5 // pred_region
        %s253 = ssub.s32 %s10, 2
        // Predicated region
        $region45: #{tpu_custom_call.1} parent=43 // pred_check
          %p254 = pneg %p107
        $region46: #{tpu_custom_call.1} parent=43 // pred_check_branch
          %256 = sbr.rel (%p254) target = $region48
        $region47: #{tpu_custom_call.1} parent=43 // pred_region
          %p257 = scmp.lt.s32.totalorder %s16, 1
          %s258 = scalar_select %p257, %s16, 1
          %s259 = smul.addr %s258, 8
          %s260 = scalar_lea.vmem %s3, %s259
        $region48: #{tpu_custom_call.1} parent=43 // pred_fallthru
          _
      $region44: #{tpu_custom_call.1} parent=5 // pred_fallthru
        _
    $region6: #{tpu_custom_call.1} parent=1 // loop_footer
      %s14 = sadd.s32 1, %s10
    $region7: #{tpu_custom_call.1} parent=1 // loop_footer_branch
      %9 = sbr.rel target = $region3
    $region8: #{tpu_custom_call.1} parent=1 // loop_exit
      _
    %261 = vsyncpa [#allocation3], 1
    %s262 = scalar_lea.sflag [#allocation3], 1
    %263 = vsyncpa %s262, 1

</llo_original>
